<compile_context>
chip_gen: v7x
topology: tpu7x:2x2x1
jax: 0.10.0
libtpu: 0.0.40
codegen_flags: <defaults>
</compile_context>

<pallas_src>
import functools

import jax
import jax.numpy as jnp
from jax import lax
from jax.experimental import pallas as pl
from jax.experimental.pallas import tpu as pltpu

# Deterministic in-script "config" (the reference reads these from a global config dict).
CNT_WEIGHT = 10.0
MCH_WEIGHT = 80.0
LYAP_WEIGHT = 1.0
NUM_INNER_ITERATIONS = 4  # unused: InnerRL is not defined in the reference module

_LANES = 128
_SUBLANES = 8
_MAX_BLOCK_ROWS = 2048           # 2048 x 128 f32 = 1 MiB per slab per pipeline buffer
_SMALL_TOTAL_BYTES = 4 << 20     # <= 4 MiB total -> single grid=() whole-array kernel


def _round_up(n, m):
    return ((n + m - 1) // m) * m


# ---------------------------------------------------------------------------
# Small path: one grid=() kernel, every tensor whole in VMEM (native dtype),
# the three scalar sums written straight to SMEM.  No pad / concat / zero slab.
# ---------------------------------------------------------------------------
def _whole_sums_kernel(xt_ref, xh_ref, wi_ref, eh_ref, rh_ref, out_ref):
    f32 = jnp.float32
    out_ref[0] = jnp.sum(jnp.abs(xt_ref[...].astype(f32) - xh_ref[...].astype(f32)))
    out_ref[1] = jnp.sum(jnp.abs(wi_ref[...].astype(f32) - eh_ref[...].astype(f32)))
    out_ref[2] = jnp.sum(rh_ref[...].astype(f32))


def _loss_sums_whole(x_t, x_hat, W_i, e_hat, r_hat):
    """f32[3] = [sum|x_t-x_hat|, sum|W_i-e_hat|, sum r_hat] in a single grid=() call."""
    args = [v.reshape(1, -1) for v in (x_t, x_hat, W_i, e_hat, r_hat)]  # free views
    return pl.pallas_call(
        _whole_sums_kernel,
        out_shape=jax.ShapeDtypeStruct((3,), jnp.float32),
        in_specs=[pl.BlockSpec(memory_space=pltpu.MemorySpace.VMEM)] * 5,
        out_specs=pl.BlockSpec(memory_space=pltpu.MemorySpace.SMEM),
    )(*args)


# ---------------------------------------------------------------------------
# Streaming path (large inputs): tiled |a - b| sum per pair, both TensorCores.
# ---------------------------------------------------------------------------
def _pair_sum_kernel(a_ref, b_ref, out_ref, *, nrows, nb_half, block_rows):
    """Streams an (nrows, 128) slab pair in (block_rows, 128) blocks.

    Grid = (2, nb_half): leading 'parallel' axis splits the block range across
    TensorCores (v7x); trailing 'arbitrary' axis is the reduction.  out_ref
    (block (1, 8, 128)) is this core's resident vreg accumulator.
    """
    c = pl.program_id(0)
    j = pl.program_id(1)

    @pl.when(j == 0)
    def _init():
        out_ref[...] = jnp.zeros_like(out_ref)

    block_id = c * nb_half + j
    d = a_ref[...].astype(jnp.float32) - b_ref[...].astype(jnp.float32)
    v = jnp.abs(d)
    # Row mask covers both the ragged last block and the clamped overhang blocks
    # (when 2*nb_half > nb).  A select (not a multiply) so undefined data in the
    # out-of-bounds part of a partial block cannot propagate NaN/Inf.
    row = lax.broadcasted_iota(jnp.int32, (block_rows, _LANES), 0) + block_id * block_rows
    v = jnp.where(row < nrows, v, 0.0)
    partial = v.reshape(-1, _SUBLANES, _LANES).sum(axis=0)          # (8, 128), VPU adds
    out_ref[...] += partial.reshape(1, _SUBLANES, _LANES)


def _rows128(x):
    """(-1, 128) view of a tensor.  Free reshape when numel % 128 == 0; otherwise
    pads only this tensor's tail to the next lane boundary (zeros contribute 0)."""
    f = x.reshape(-1)
    rem = f.shape[0] % _LANES
    if rem:
        f = jnp.pad(f, (0, _LANES - rem))
    return f.reshape(-1, _LANES)


def _streamed_abs_diff_sum(a, b):
    assert a.size == b.size, "L1 pair must have the same number of elements"
    a2 = _rows128(a)
    b2 = _rows128(b)
    nrows = a2.shape[0]

    # Block size: as large as useful (amortizes the ~0.35us/step fixed cost) while
    # keeping 2 slabs x 2 pipeline buffers <= ~4 MiB f32 — well under v5e's 16 MiB
    # default scoped VMEM and trivially under v6e/v7x budgets.  Multiple of 16 so
    # bf16 sublane packing is also happy.
    block_rows = min(_MAX_BLOCK_ROWS,
                     max(2 * _SUBLANES, _round_up(pl.cdiv(nrows, 4), 2 * _SUBLANES)))
    nb = pl.cdiv(nrows, block_rows)
    nb_half = pl.cdiv(nb, 2)

    # Clamp so the overhang core never issues an out-of-range block DMA; its
    # contribution is zeroed by the in-kernel row mask.
    idx = lambda c, j: (jnp.minimum(c * nb_half + j, nb - 1), 0)

    kernel = functools.partial(_pair_sum_kernel, nrows=nrows,
                               nb_half=nb_half, block_rows=block_rows)
    partials = pl.pallas_call(
        kernel,
        out_shape=jax.ShapeDtypeStruct((2, _SUBLANES, _LANES), jnp.float32),
        grid=(2, nb_half),
        in_specs=[pl.BlockSpec((block_rows, _LANES), idx),
                  pl.BlockSpec((block_rows, _LANES), idx)],
        out_specs=pl.BlockSpec((1, _SUBLANES, _LANES), lambda c, j: (c, 0, 0)),
        compiler_params=pltpu.CompilerParams(
            dimension_semantics=("parallel", "arbitrary")),
    )(a2, b2)
    return jnp.sum(partials)   # 2x8x128 partials -> scalar (trivial)


def _loss_sums_streaming(x_t, x_hat, W_i, e_hat, r_hat):
    s_cnt = _streamed_abs_diff_sum(x_t, x_hat)
    s_mch = _streamed_abs_diff_sum(W_i, e_hat)
    # r_hat: no kernel and no zero slab — a plain fused XLA reduce is already at
    # HBM roofline for a single read-and-sum.
    s_adv = jnp.sum(r_hat.astype(jnp.float32))
    return jnp.stack([s_cnt, s_mch, s_adv])


def _loss_sums(x_t, x_hat, W_i, e_hat, r_hat):
    total_bytes = sum(int(v.size) * v.dtype.itemsize
                      for v in (x_t, x_hat, W_i, e_hat, r_hat))
    if total_bytes <= _SMALL_TOTAL_BYTES:
        return _loss_sums_whole(x_t, x_hat, W_i, e_hat, r_hat)
    return _loss_sums_streaming(x_t, x_hat, W_i, e_hat, r_hat)


@jax.jit
def loss_eg_forward(x_t, x_hat, r_hat, e_hat, W_i, y_t):
    """Mirrors LossEG.forward: returns (loss[1], info dict of jnp scalars)."""
    sums = _loss_sums(x_t, x_hat, W_i, e_hat, r_hat)

    # L1Loss / mean reductions: divide by true element counts (padding is zero).
    cnt = sums[0] * jnp.float32(CNT_WEIGHT / x_t.size)     # loss_cnt
    mch = sums[1] * jnp.float32(MCH_WEIGHT / W_i.size)     # loss_mch
    adv = -(sums[2] * jnp.float32(1.0 / r_hat.size))       # loss_adv

    # TODO(synk): loss_lyap depends on InnerRL.linearize/train/loss which is not
    # defined in the reference module; no Pallas equivalent, contributing 0 here.
    lyap = jnp.float32(0.0) * LYAP_WEIGHT

    loss = (lyap + mch + adv + cnt).reshape(1)
    info = {"lyap": lyap, "mch": mch, "adv": adv, "cnt": cnt}  # jnp scalars, no host sync
    return loss, info


def _reference_forward(x_t, x_hat, r_hat, e_hat, W_i, y_t):
    f32 = jnp.float32
    cnt = jnp.mean(jnp.abs(x_t.reshape(-1).astype(f32)
                           - x_hat.reshape(-1).astype(f32))) * CNT_WEIGHT
    mch = jnp.mean(jnp.abs(W_i.reshape(-1).astype(f32)
                           - e_hat.reshape(-1).astype(f32))) * MCH_WEIGHT
    adv = -jnp.mean(r_hat.astype(f32))
    lyap = jnp.float32(0.0) * LYAP_WEIGHT
    return (lyap + mch + adv + cnt).reshape(1)


if __name__ == "__main__":
    key = jax.random.PRNGKey(0)
    k = jax.random.split(key, 12)

    # --- small demo shapes: exercises the single grid=() whole-array kernel ---
    B = 2
    # x_hat last dim >= 4 (omega[:3], rotorfs[3:]); y_t last dim >= 10 ([:5],[5:9],[9:])
    x_t = jax.random.normal(k[0], (B, 7), jnp.float32)
    x_hat = jax.random.normal(k[1], (B, 7), jnp.float32)
    r_hat = jax.random.normal(k[2], (B, 1), jnp.float32)
    e_hat = jax.random.normal(k[3], (B, 32), jnp.float32)
    W_i = jax.random.normal(k[4], (B, 32), jnp.float32)
    y_t = jax.random.normal(k[5], (B, 13), jnp.float32)

    loss, info = loss_eg_forward(x_t, x_hat, r_hat, e_hat, W_i, y_t)
    loss = jax.block_until_ready(loss)
    ref = _reference_forward(x_t, x_hat, r_hat, e_hat, W_i, y_t)
    assert loss.shape == (1,)
    assert jnp.allclose(loss, ref, rtol=1e-5, atol=1e-5), (loss, ref)
    assert set(info) == {"lyap", "mch", "adv", "cnt"}

    # --- bf16 inputs: native dtype flows through the DMA, cast happens in-vreg ---
    loss_bf, _ = loss_eg_forward(x_t.astype(jnp.bfloat16), x_hat.astype(jnp.bfloat16),
                                 r_hat, e_hat, W_i, y_t)
    ref_bf = _reference_forward(x_t.astype(jnp.bfloat16), x_hat.astype(jnp.bfloat16),
                                r_hat, e_hat, W_i, y_t)
    assert jnp.allclose(jax.block_until_ready(loss_bf), ref_bf, rtol=1e-4, atol=1e-4)

    # --- medium shapes (> 4 MiB total): exercises the streaming dual-core kernel,
    #     including a non-lane-aligned pair (ragged tail + partial-block masking) ---
    x_t_m = jax.random.normal(k[6], (16, 3, 128, 128), jnp.float32)
    x_hat_m = jax.random.normal(k[7], (16, 3, 128, 128), jnp.float32)
    W_i_m = jax.random.normal(k[8], (8, 517), jnp.float32)
    e_hat_m = jax.random.normal(k[9], (8, 517), jnp.float32)
    r_hat_m = jax.random.normal(k[10], (16, 8), jnp.float32)
    y_t_m = jax.random.normal(k[11], (16, 13), jnp.float32)

    loss_m, _ = loss_eg_forward(x_t_m, x_hat_m, r_hat_m, e_hat_m, W_i_m, y_t_m)
    loss_m = jax.block_until_ready(loss_m)
    ref_m = _reference_forward(x_t_m, x_hat_m, r_hat_m, e_hat_m, W_i_m, y_t_m)
    assert jnp.allclose(loss_m, ref_m, rtol=1e-4, atol=1e-4), (loss_m, ref_m)

    print("KERNEL_OK")
</pallas_src>

<mosaic_0001>
module attributes {stable_mosaic.version = 11 : i64} {
  func.func @_whole_sums_kernel(%arg0: memref<1x14xf32, #tpu.memory_space<vmem>>, %arg1: memref<1x14xf32, #tpu.memory_space<vmem>>, %arg2: memref<1x64xf32, #tpu.memory_space<vmem>>, %arg3: memref<1x64xf32, #tpu.memory_space<vmem>>, %arg4: memref<1x2xf32, #tpu.memory_space<vmem>>, %arg5: memref<3xf32, #tpu.memory_space<smem>>) attributes {dimension_semantics = [], scalar_prefetch = 0 : i64, scratch_operands = 0 : i64, tpu.core_type = #tpu.core_type<tc>} {
    %c0 = arith.constant 0 : index
    %c0_0 = arith.constant 0 : index
    %0 = vector.load %arg0[%c0, %c0_0] : memref<1x14xf32, #tpu.memory_space<vmem>>, vector<1x14xf32>
    %c0_1 = arith.constant 0 : index
    %c0_2 = arith.constant 0 : index
    %1 = vector.load %arg1[%c0_1, %c0_2] : memref<1x14xf32, #tpu.memory_space<vmem>>, vector<1x14xf32>
    %2 = arith.subf %0, %1 : vector<1x14xf32>
    %3 = math.absf %2 : vector<1x14xf32>
    %4 = vector.shape_cast %3 : vector<1x14xf32> to vector<1x1x14xf32>
    %cst = arith.constant dense<0.000000e+00> : vector<1xf32>
    %5 = vector.multi_reduction <add>, %4, %cst [1, 2] : vector<1x1x14xf32> to vector<1xf32>
    %6 = vector.shape_cast %5 : vector<1xf32> to vector<1x1x1xf32>
    %7 = vector.extract %6[0, 0, 0] : f32 from vector<1x1x1xf32>
    %c0_3 = arith.constant 0 : index
    %8 = memref.load %arg5[%c0_3] : memref<3xf32, #tpu.memory_space<smem>>
    memref.store %7, %arg5[%c0_3] : memref<3xf32, #tpu.memory_space<smem>>
    %c0_4 = arith.constant 0 : index
    %c0_5 = arith.constant 0 : index
    %9 = vector.load %arg2[%c0_4, %c0_5] : memref<1x64xf32, #tpu.memory_space<vmem>>, vector<1x64xf32>
    %c0_6 = arith.constant 0 : index
    %c0_7 = arith.constant 0 : index
    %10 = vector.load %arg3[%c0_6, %c0_7] : memref<1x64xf32, #tpu.memory_space<vmem>>, vector<1x64xf32>
    %11 = arith.subf %9, %10 : vector<1x64xf32>
    %12 = math.absf %11 : vector<1x64xf32>
    %13 = vector.shape_cast %12 : vector<1x64xf32> to vector<1x1x64xf32>
    %cst_8 = arith.constant dense<0.000000e+00> : vector<1xf32>
    %14 = vector.multi_reduction <add>, %13, %cst_8 [1, 2] : vector<1x1x64xf32> to vector<1xf32>
    %15 = vector.shape_cast %14 : vector<1xf32> to vector<1x1x1xf32>
    %16 = vector.extract %15[0, 0, 0] : f32 from vector<1x1x1xf32>
    %c1 = arith.constant 1 : index
    %17 = memref.load %arg5[%c1] : memref<3xf32, #tpu.memory_space<smem>>
    memref.store %16, %arg5[%c1] : memref<3xf32, #tpu.memory_space<smem>>
    %c0_9 = arith.constant 0 : index
    %c0_10 = arith.constant 0 : index
    %18 = vector.load %arg4[%c0_9, %c0_10] : memref<1x2xf32, #tpu.memory_space<vmem>>, vector<1x2xf32>
    %19 = vector.shape_cast %18 : vector<1x2xf32> to vector<1x1x2xf32>
    %cst_11 = arith.constant dense<0.000000e+00> : vector<1xf32>
    %20 = vector.multi_reduction <add>, %19, %cst_11 [1, 2] : vector<1x1x2xf32> to vector<1xf32>
    %21 = vector.shape_cast %20 : vector<1xf32> to vector<1x1x1xf32>
    %22 = vector.extract %21[0, 0, 0] : f32 from vector<1x1x1xf32>
    %c2 = arith.constant 2 : index
    %23 = memref.load %arg5[%c2] : memref<3xf32, #tpu.memory_space<smem>>
    memref.store %22, %arg5[%c2] : memref<3xf32, #tpu.memory_space<smem>>
    return
  }
}

</mosaic_0001>

<llo_original>
// kernel: loss_eg_forward.1
$region0: #{loss_eg_forward.1}
  #allocation0 [shape = 'u32[]', space=smem, size = 0x4, offset = 0x4, fixed_abs, tag = 'smem constant byte address 0x4 - core index']
  #allocation1 [shape = 'u32[144,128]{1,0:T(1,128)}', space=vmem, size = 0x12000, scoped, tag = 'internal scratch']
  %s0 = inlined_call_operand.vmem [shape: f32[1,14], index: 0, kind: input, shape index: {}]
  %s1 = inlined_call_operand.vmem [shape: f32[1,14], index: 1, kind: input, shape index: {}]
  %s2 = inlined_call_operand.vmem [shape: f32[1,64], index: 2, kind: input, shape index: {}]
  %s3 = inlined_call_operand.vmem [shape: f32[1,64], index: 3, kind: input, shape index: {}]
  %s4 = inlined_call_operand.vmem [shape: f32[1,2], index: 4, kind: input, shape index: {}]
  %s5 = inlined_call_operand.vmem [shape: f32[3], index: 5, kind: output, shape index: {}]
  %s6 = sld [smem:[#allocation0]]
  $region30: #{loss_eg_forward.1} parent=0
    _
  %s8 = ssub.s32 1, %s6
  %s9 = scalar_select 0, %s8, %s6
  $region1: #{loss_eg_forward.1} parent=0
    #allocation2 [shape = 'u8[512]{0}', space=smem, size = 0x200, scoped, tag = 'output window, operand 0, single buffered']
    #allocation3 [shape = 's32[1]{0}', space=sflag, size = 0x4, scoped, tag = 'scoped memory for loss_eg_forward.1']
    %10 = vsyncpa [#allocation3], 0
    // Predicated region
    $region2: #{loss_eg_forward.1} parent=1 // pred_check
      _
    $region3: #{loss_eg_forward.1} parent=1 // pred_check_branch
      %12 = sbr.rel (0) target = $region5
    $region4: #{loss_eg_forward.1} parent=1 // pred_region
      _
    $region5: #{loss_eg_forward.1} parent=1 // pred_fallthru
      _
    // Predicated region
    $region6: #{loss_eg_forward.1} parent=1 // pred_check
      _
    $region7: #{loss_eg_forward.1} parent=1 // pred_check_branch
      %14 = sbr.rel (0) target = $region9
    $region8: #{loss_eg_forward.1} parent=1 // pred_region
      _
    $region9: #{loss_eg_forward.1} parent=1 // pred_fallthru
      _
    // Predicated region
    $region10: #{loss_eg_forward.1} parent=1 // pred_check
      _
    $region11: #{loss_eg_forward.1} parent=1 // pred_check_branch
      %16 = sbr.rel (0) target = $region13
    $region12: #{loss_eg_forward.1} parent=1 // pred_region
      _
    $region13: #{loss_eg_forward.1} parent=1 // pred_fallthru
      _
    // Predicated region
    $region14: #{loss_eg_forward.1} parent=1 // pred_check
      _
    $region15: #{loss_eg_forward.1} parent=1 // pred_check_branch
      %18 = sbr.rel (0) target = $region17
    $region16: #{loss_eg_forward.1} parent=1 // pred_region
      _
    $region17: #{loss_eg_forward.1} parent=1 // pred_fallthru
      _
    // Predicated region
    $region18: #{loss_eg_forward.1} parent=1 // pred_check
      _
    $region19: #{loss_eg_forward.1} parent=1 // pred_check_branch
      %20 = sbr.rel (0) target = $region21
    $region20: #{loss_eg_forward.1} parent=1 // pred_region
      _
    $region21: #{loss_eg_forward.1} parent=1 // pred_fallthru
      _
    %v21 = vld [vmem:[%s0] sm:$0x1]
    %v22 = vld [vmem:[%s1] sm:$0x1]
    %v23 = vsub.f32 %v21, %v22
    %v24 = vand.u32 2147483647, %v23
    %vm25 = vcmask 106496
    %v26 = vsel %vm25, %v24, 0.0
    %27 = vadd.xlane.f32.xlu0 %v26
    %v28 = vpop.xlane.xlu0 %27
    %v29 = vrot.slane %v28, 4
    %v30 = vadd.f32 %v28, %v29
    %v31 = vrot.slane %v30, 2
    %v32 = vadd.f32 %v30, %v31
    %v33 = vrot.slane %v32, 1
    %v34 = vadd.f32 %v32, %v33
    %s35 = vtos %v34
    %s36 = scalar_lea.smem [#allocation2], 0
    %37 = sst [smem:[%s36]] %s35
    %v38 = vld [vmem:[%s2] sm:$0x1]
    %v39 = vld [vmem:[%s3] sm:$0x1]
    %v40 = vsub.f32 %v38, %v39
    %v41 = vand.u32 2147483647, %v40
    %vm42 = vcmask 516096
    %v43 = vsel %vm42, %v41, 0.0
    %44 = vadd.xlane.f32.xlu0 %v43
    %v45 = vpop.xlane.xlu0 %44
    %v46 = vrot.slane %v45, 4
    %v47 = vadd.f32 %v45, %v46
    %v48 = vrot.slane %v47, 2
    %v49 = vadd.f32 %v47, %v48
    %v50 = vrot.slane %v49, 1
    %v51 = vadd.f32 %v49, %v50
    %s52 = vtos %v51
    %s53 = scalar_lea.smem [#allocation2], 1
    %54 = sst [smem:[%s53]] %s52
    %v55 = vld [vmem:[%s4] sm:$0x1]
    %vm56 = vcmask 8192
    %v57 = vsel %vm56, %v55, 0.0
    %58 = vadd.xlane.f32.xlu0 %v57
    %v59 = vpop.xlane.xlu0 %58
    %v60 = vrot.slane %v59, 4
    %v61 = vadd.f32 %v59, %v60
    %v62 = vrot.slane %v61, 2
    %v63 = vadd.f32 %v61, %v62
    %v64 = vrot.slane %v63, 1
    %v65 = vadd.f32 %v63, %v64
    %s66 = vtos %v65
    %s67 = scalar_lea.smem [#allocation2], 2
    %68 = sst [smem:[%s67]] %s66
    // Predicated region
    $region22: #{loss_eg_forward.1} parent=1 // pred_check
      _
    $region23: #{loss_eg_forward.1} parent=1 // pred_check_branch
      %70 = sbr.rel (0) target = $region25
    $region24: #{loss_eg_forward.1} parent=1 // pred_region
      %s72 = ssub.s32 16, 16
      %73 = vsyncadd [#allocation3], %s72
      %s75 = sshll.u32 %s5, 4
      %s76 = int_to_ptr.vmem [resolvable:$true] %s75
      %78 = dma.smem_to_vmem [#allocation2], 16, %s76, [#allocation3]
    $region25: #{loss_eg_forward.1} parent=1 // pred_fallthru
      _
    // Predicated region
    $region26: #{loss_eg_forward.1} parent=1 // pred_check
      _
    $region27: #{loss_eg_forward.1} parent=1 // pred_check_branch
      %80 = sbr.rel (0) target = $region29
    $region28: #{loss_eg_forward.1} parent=1 // pred_region
      %81 = dma.done [#allocation3], 16
    $region29: #{loss_eg_forward.1} parent=1 // pred_fallthru
      _
    %82 = sfence
    %83 = vsyncpa [#allocation3], 1

</llo_original>
